<compile_context>
chip_gen: v6e
topology: v6e:2x2x1
jax: 0.10.0
libtpu: 0.0.40
codegen_flags: <defaults>
</compile_context>

<pallas_src>
import jax
import jax.numpy as jnp
from jax.experimental import pallas as pl
from jax.experimental.pallas import tpu as pltpu


_EPS = 1e-7
_TILE_BYTES = 4 * 1024 * 1024  # ~4 MiB per input tile (x2 for double buffering)


def _divisor_tile(total, multiple, limit):
    """Largest t <= limit with t % multiple == 0 and total % t == 0.

    Falls back to `total` (a full-extent block dim is always legal)."""
    best = None
    t = multiple
    cap = min(total, limit)
    while t <= cap:
        if total % t == 0:
            best = t
        t += multiple
    return best if best is not None else total


def _fused_pool_l2_kernel(x_ref, o_ref):
    # x_ref: (Nb, C, THW) lane-dense spatial chunk (all channels resident).
    # o_ref: (Nb, C) accumulator, same output block revisited across the hw axis.
    hw_step = pl.program_id(1)
    chunk_max = jnp.max(x_ref[...], axis=-1).astype(o_ref.dtype)  # lane-axis reduce

    @pl.when(hw_step == 0)
    def _():
        o_ref[...] = chunk_max

    @pl.when(hw_step != 0)
    def _():
        o_ref[...] = jnp.maximum(o_ref[...], chunk_max)

    # Epilogue on the last hw chunk: L2 normalize over channels (lane axis) in place,
    # matching PyTorch Normalize(power=2): x / (sqrt(sum_C x^2) + 1e-7).
    @pl.when(hw_step == pl.num_programs(1) - 1)
    def _():
        p = o_ref[...].astype(jnp.float32)
        norm = jnp.sqrt(jnp.sum(p * p, axis=-1, keepdims=True))  # (Nb, 1)
        o_ref[...] = (p / (norm + _EPS)).astype(o_ref.dtype)


def _global_maxpool_kernel(x_ref, o_ref):
    # Fallback (channel-tiled) path. x_ref: (Nb, Ct, THW); o_ref: (Nb, Ct).
    hw_step = pl.program_id(2)
    chunk_max = jnp.max(x_ref[...], axis=-1).astype(o_ref.dtype)

    @pl.when(hw_step == 0)
    def _():
        o_ref[...] = chunk_max

    @pl.when(hw_step != 0)
    def _():
        o_ref[...] = jnp.maximum(o_ref[...], chunk_max)


def _l2norm_kernel(p_ref, o_ref):
    # p_ref / o_ref: (Nb, C) with channels on the lane axis.
    p = p_ref[...].astype(jnp.float32)
    norm = jnp.sqrt(jnp.sum(p * p, axis=-1, keepdims=True))  # (Nb, 1)
    o_ref[...] = (p / (norm + _EPS)).astype(o_ref.dtype)


def poolingf(x):
    """AdaptiveMaxPool2d(1) followed by channel-wise L2 normalization (power=2)."""
    N, C, H, W = x.shape
    HW = H * W
    x3 = x.reshape(N, C, HW)  # free metadata reshape for contiguous NCHW
    elem = x.dtype.itemsize

    # ---- tile sizing: blocks stay (8,128)-legal and <= ~4 MiB ----
    thw = _divisor_tile(HW, 128, 2048)                                   # lane axis
    ct = _divisor_tile(C, 128, max(128, _TILE_BYTES // (elem * thw)))    # mult of 128 or full C
    nb = _divisor_tile(N, 8, max(1, _TILE_BYTES // (elem * thw * ct)))   # mult of 8 or full N

    if ct == C:
        # Fused path: pool + normalize in one pass; no intermediate HBM tensor.
        normalized = pl.pallas_call(
            _fused_pool_l2_kernel,
            out_shape=jax.ShapeDtypeStruct((N, C), x.dtype),
            grid_spec=pltpu.PrefetchScalarGridSpec(
                num_scalar_prefetch=0,
                grid=(N // nb, HW // thw),
                in_specs=[pl.BlockSpec((nb, C, thw), lambda n, h: (n, 0, h))],
                out_specs=pl.BlockSpec((nb, C), lambda n, h: (n, 0)),
            ),
            compiler_params=pltpu.CompilerParams(
                dimension_semantics=("parallel", "arbitrary"),
            ),
        )(x3)
    else:
        # Channel-tiled path (very large C): tiled max pool, then tiny L2 kernel.
        pooled = pl.pallas_call(
            _global_maxpool_kernel,
            out_shape=jax.ShapeDtypeStruct((N, C), x.dtype),
            grid_spec=pltpu.PrefetchScalarGridSpec(
                num_scalar_prefetch=0,
                grid=(N // nb, C // ct, HW // thw),
                in_specs=[pl.BlockSpec((nb, ct, thw), lambda n, c, h: (n, c, h))],
                out_specs=pl.BlockSpec((nb, ct), lambda n, c, h: (n, c)),
            ),
            compiler_params=pltpu.CompilerParams(
                dimension_semantics=("parallel", "parallel", "arbitrary"),
            ),
        )(x3)

        nb2 = _divisor_tile(N, 8, 1024)
        normalized = pl.pallas_call(
            _l2norm_kernel,
            out_shape=jax.ShapeDtypeStruct((N, C), x.dtype),
            grid_spec=pltpu.PrefetchScalarGridSpec(
                num_scalar_prefetch=0,
                grid=(N // nb2,),
                in_specs=[pl.BlockSpec((nb2, C), lambda i: (i, 0))],
                out_specs=pl.BlockSpec((nb2, C), lambda i: (i, 0)),
            ),
            compiler_params=pltpu.CompilerParams(
                dimension_semantics=("parallel",),
            ),
        )(pooled)

    return normalized.reshape(N, C, 1, 1)


if __name__ == "__main__":
    key = jax.random.PRNGKey(0)
    N, C, H, W = 2, 4, 16, 16
    x = jax.random.normal(key, (N, C, H, W), dtype=jnp.float32)

    out = jax.block_until_ready(poolingf(x))

    # Reference (mirrors PyTorch: AdaptiveMaxPool2d(1) -> x / (||x||_2 over C + 1e-7))
    pooled_ref = jnp.max(x, axis=(2, 3), keepdims=True)
    norm_ref = jnp.sqrt(jnp.sum(pooled_ref ** 2, axis=1, keepdims=True))
    ref = pooled_ref / (norm_ref + _EPS)

    assert out.shape == (N, C, 1, 1), out.shape
    assert jnp.allclose(out, ref, atol=1e-5, rtol=1e-5), float(jnp.max(jnp.abs(out - ref)))

    print("KERNEL_OK")
</pallas_src>

<mosaic_0001>
module attributes {stable_mosaic.version = 11 : i64} {
  func.func @_fused_pool_l2_kernel(%arg0: i32, %arg1: i32, %arg2: memref<2x4x256xf32, #tpu.memory_space<vmem>>, %arg3: memref<2x4xf32, #tpu.memory_space<vmem>>) attributes {dimension_semantics = [#tpu.dimension_semantics<parallel>, #tpu.dimension_semantics<arbitrary>], iteration_bounds = array<i64: 1, 1>, scalar_prefetch = 0 : i64, scratch_operands = 0 : i64, tpu.core_type = #tpu.core_type<tc>, window_params = [{transform_indices = @transform_0, window_bounds = array<i64: 2, 4, 256>}, {transform_indices = @transform_1, window_bounds = array<i64: 2, 4>}]} {
    %c0 = arith.constant 0 : index
    %c0_0 = arith.constant 0 : index
    %c0_1 = arith.constant 0 : index
    %0 = vector.load %arg2[%c0, %c0_0, %c0_1] : memref<2x4x256xf32, #tpu.memory_space<vmem>>, vector<2x4x256xf32>
    %cst = arith.constant dense<0xFF800000> : vector<2x4xf32>
    %1 = vector.multi_reduction <maximumf>, %0, %cst [2] : vector<2x4x256xf32> to vector<2x4xf32>
    %c0_i32 = arith.constant 0 : i32
    %2 = arith.cmpi eq, %arg1, %c0_i32 : i32
    %3 = arith.extui %2 : i1 to i32
    %c0_i32_2 = arith.constant 0 : i32
    %4 = arith.cmpi ne, %3, %c0_i32_2 : i32
    scf.if %4 {
      %c0_7 = arith.constant 0 : index
      %c0_8 = arith.constant 0 : index
      %11 = vector.load %arg3[%c0_7, %c0_8] : memref<2x4xf32, #tpu.memory_space<vmem>>, vector<2x4xf32>
      tpu.vector_store %arg3[%c0_7, %c0_8], %1 {strides = array<i32>} : memref<2x4xf32, #tpu.memory_space<vmem>>, vector<2x4xf32>,
    } else {
    }
    %c0_i32_3 = arith.constant 0 : i32
    %5 = arith.cmpi ne, %arg1, %c0_i32_3 : i32
    %6 = arith.extui %5 : i1 to i32
    %c0_i32_4 = arith.constant 0 : i32
    %7 = arith.cmpi ne, %6, %c0_i32_4 : i32
    scf.if %7 {
      %c0_7 = arith.constant 0 : index
      %c0_8 = arith.constant 0 : index
      %11 = vector.load %arg3[%c0_7, %c0_8] : memref<2x4xf32, #tpu.memory_space<vmem>>, vector<2x4xf32>
      %12 = arith.maximumf %11, %1 : vector<2x4xf32>
      %c0_9 = arith.constant 0 : index
      %c0_10 = arith.constant 0 : index
      %13 = vector.load %arg3[%c0_9, %c0_10] : memref<2x4xf32, #tpu.memory_space<vmem>>, vector<2x4xf32>
      tpu.vector_store %arg3[%c0_9, %c0_10], %12 {strides = array<i32>} : memref<2x4xf32, #tpu.memory_space<vmem>>, vector<2x4xf32>,
    } else {
    }
    %c0_i32_5 = arith.constant 0 : i32
    %8 = arith.cmpi eq, %arg1, %c0_i32_5 : i32
    %9 = arith.extui %8 : i1 to i32
    %c0_i32_6 = arith.constant 0 : i32
    %10 = arith.cmpi ne, %9, %c0_i32_6 : i32
    scf.if %10 {
      %c0_7 = arith.constant 0 : index
      %c0_8 = arith.constant 0 : index
      %11 = vector.load %arg3[%c0_7, %c0_8] : memref<2x4xf32, #tpu.memory_space<vmem>>, vector<2x4xf32>
      %12 = arith.mulf %11, %11 : vector<2x4xf32>
      %cst_9 = arith.constant dense<0.000000e+00> : vector<2xf32>
      %13 = vector.multi_reduction <add>, %12, %cst_9 [1] : vector<2x4xf32> to vector<2xf32>
      %14 = vector.shape_cast %13 : vector<2xf32> to vector<2x1xf32>
      %15 = math.sqrt %14 : vector<2x1xf32>
      %cst_10 = arith.constant 1.000000e-07 : f32
      %16 = vector.broadcast %cst_10 : f32 to vector<2x1xf32>
      %17 = arith.addf %15, %16 : vector<2x1xf32>
      %18 = vector.broadcast %17 : vector<2x1xf32> to vector<2x4xf32>
      %19 = arith.divf %11, %18 : vector<2x4xf32>
      %c0_11 = arith.constant 0 : index
      %c0_12 = arith.constant 0 : index
      %20 = vector.load %arg3[%c0_11, %c0_12] : memref<2x4xf32, #tpu.memory_space<vmem>>, vector<2x4xf32>
      tpu.vector_store %arg3[%c0_11, %c0_12], %19 {strides = array<i32>} : memref<2x4xf32, #tpu.memory_space<vmem>>, vector<2x4xf32>,
    } else {
    }
    return
  }
  func.func @transform_0(%arg0: i32, %arg1: i32) -> (i32, i32, i32) {
    %c0_i32 = arith.constant 0 : i32
    %c0_i32_0 = arith.constant 0 : i32
    return %arg0, %c0_i32, %arg1 : i32, i32, i32
  }
  func.func @transform_1(%arg0: i32, %arg1: i32) -> (i32, i32) {
    %c0_i32 = arith.constant 0 : i32
    %c0_i32_0 = arith.constant 0 : i32
    return %arg0, %c0_i32 : i32, i32
  }
}

</mosaic_0001>

<llo_original>
// kernel: tpu_custom_call.1
$region0: #{tpu_custom_call.1}
  #allocation0 [shape = 'u32[]', space=smem, size = 0x4, offset = 0x4, fixed_abs, tag = 'smem constant byte address 0x4 - core index']
  #allocation1 [shape = 'u32[144,128]{1,0:T(1,128)}', space=vmem, size = 0x12000, scoped, tag = 'internal scratch']
  %s0 = inlined_call_operand.hbm [shape: f32[2,4,256], index: 0, kind: input, shape index: {}]
  %s1 = inlined_call_operand.hbm [shape: f32[2,4], index: 1, kind: output, shape index: {}]
  %s2 = sld [smem:[#allocation0]]
  $region30: #{tpu_custom_call.1} parent=0
    _
  %s4 = ssub.s32 1, %s2
  %s5 = scalar_select 0, %s4, %s2
  $region1: #{tpu_custom_call.1} parent=0
    #allocation2 [shape = 'u8[8192]{0}', space=vmem, size = 0x2000, scoped, tag = 'input window, operand 0, single buffered']
    #allocation3 [shape = 's32[1]{0}', space=sflag, size = 0x4, scoped, tag = 'scoped memory for tpu_custom_call.1']
    #allocation4 [shape = 's32[1]{0}', space=sflag, size = 0x4, scoped, tag = 'scoped memory for tpu_custom_call.1']
    #allocation5 [shape = 'u8[1024]{0}', space=vmem, size = 0x400, scoped, tag = 'output window, operand 0, single buffered']
    %6 = vsyncpa [#allocation3], 0
    %7 = vsyncpa [#allocation4], 0
    // Predicated region
    $region2: #{tpu_custom_call.1} parent=1 // pred_check
      _
    $region3: #{tpu_custom_call.1} parent=1 // pred_check_branch
      %9 = sbr.rel (0) target = $region5
    $region4: #{tpu_custom_call.1} parent=1 // pred_region
      %s11 = ssub.s32 256, 256
      %12 = vsyncadd [#allocation3], %s11
      %s13 = sshll.u32 [#allocation2], 4
      %s14 = int_to_ptr.vmem [resolvable:$true] %s13
      %19 = dma.hbm_to_vmem [thread:$0]  %s0, 256, %s14, [#allocation3], 128, 128, 8
    $region5: #{tpu_custom_call.1} parent=1 // pred_fallthru
      _
    // Predicated region
    $region6: #{tpu_custom_call.1} parent=1 // pred_check
      _
    $region7: #{tpu_custom_call.1} parent=1 // pred_check_branch
      %21 = sbr.rel (0) target = $region9
    $region8: #{tpu_custom_call.1} parent=1 // pred_region
      %22 = dma.done [#allocation3], 256
    $region9: #{tpu_custom_call.1} parent=1 // pred_fallthru
      _
    %v23 = vld [vmem:[#allocation2] sm:$0xff]
    %v24 = vld [vmem:[#allocation2 + $0x8] sm:$0xff]
    %v27 = vcombine.high %v23, %v23
    %v28 = vcombine.high %v24, %v24
    %vm31 = vcmask 1043456
    %v32 = vsel %vm31, %v23, -inf
    %v33 = vsel %vm31, %v27, -inf
    %v34 = vmax.f32 %v32, %v33
    %35 = vmax.xlane.f32.xlu0 %v34
    %v36 = vpop.xlane.xlu0 %35
    %v37 = vsel %vm31, %v24, -inf
    %v38 = vsel %vm31, %v28, -inf
    %v39 = vmax.f32 %v37, %v38
    %40 = vmax.xlane.f32.xlu0 %v39
    %v41 = vpop.xlane.xlu0 %40
    %p42 = scmp.eq.s32.totalorder 0, 0
    // Predicated region
    $region10: #{tpu_custom_call.1} parent=1 // pred_check
      %p43 = pneg %p42
    $region11: #{tpu_custom_call.1} parent=1 // pred_check_branch
      %45 = sbr.rel (%p43) target = $region13
    $region12: #{tpu_custom_call.1} parent=1 // pred_region
      %v48 = vlaneseq
      %v49 = vand.u32 %v48, 127
      %v50 = vlaneseq
      %v51 = vshrl.u32 %v50, 7
      %v52 = vsub.s32 %v49, %v51
      %v53 = vrot.slane %v36, %v52
      %v54 = vlaneseq
      %v55 = vshrl.u32 %v54, 7
      %v56 = vsub.s32 %v49, %v55
      %v57 = vrot.slane %v41, %v56
      %vm58 = vcmask 1041409
      %v59 = vsel %vm58, %v57, %v53
      %vm61 = vcmask 25600
      %62 = vst.msk [vmem:[#allocation5] sm:$0x3] %vm61, %v59
    $region13: #{tpu_custom_call.1} parent=1 // pred_fallthru
      _
    %p63 = scmp.ne.s32.totalorder 0, 0
    // Predicated region
    $region14: #{tpu_custom_call.1} parent=1 // pred_check
      %p64 = pneg %p63
    $region15: #{tpu_custom_call.1} parent=1 // pred_check_branch
      %66 = sbr.rel (%p64) target = $region17
    $region16: #{tpu_custom_call.1} parent=1 // pred_region
      %v67 = vld [vmem:[#allocation5] sm:$0x3]
      %v70 = vlaneseq
      %v71 = vand.u32 %v70, 127
      %v72 = vlaneseq
      %v73 = vshrl.u32 %v72, 7
      %v74 = vsub.s32 %v71, %v73
      %v75 = vrot.slane %v36, %v74
      %v76 = vlaneseq
      %v77 = vshrl.u32 %v76, 7
      %v78 = vsub.s32 %v71, %v77
      %v79 = vrot.slane %v41, %v78
      %vm80 = vcmask 1041409
      %v81 = vsel %vm80, %v79, %v75
      %v83 = vmax.f32 %v67, %v81
      %vm84 = vcmask 25600
      %85 = vst.msk [vmem:[#allocation5] sm:$0x3] %vm84, %v83
    $region17: #{tpu_custom_call.1} parent=1 // pred_fallthru
      _
    // Predicated region
    $region18: #{tpu_custom_call.1} parent=1 // pred_check
      %p86 = pneg %p42
    $region19: #{tpu_custom_call.1} parent=1 // pred_check_branch
      %88 = sbr.rel (%p86) target = $region21
    $region20: #{tpu_custom_call.1} parent=1 // pred_region
      %v89 = vld [vmem:[#allocation5] sm:$0x3]
      %v90 = vmul.f32 %v89, %v89
      %vm91 = vcmask 25600
      %v92 = vsel %vm91, %v90, 0.0
      %93 = vadd.xlane.f32.xlu0 %v92
      %v94 = vpop.xlane.xlu0 %93
      %v95 = vrsqrt.pop %v94
      %v96 = vmul.f32 %v94, %v95
      %vm97 = vcmp.eq.f32.partialorder %v94, inf
      %v98 = vsel %vm97, %v94, %v96
      %vm99 = vcmp.eq.f32.partialorder %v94, 0.0
      %v100 = vand.u32 %v94, 2147483648
      %v101 = vsel %vm99, %v100, %v98
      %v102 = vadd.f32 %v101, 1e-07
      %v103 = vrcp.pop %v102
      %v104 = vmul.f32 %v89, %v103
      %105 = vst.msk [vmem:[#allocation5] sm:$0x3] %vm91, %v104
    $region21: #{tpu_custom_call.1} parent=1 // pred_fallthru
      _
    // Predicated region
    $region22: #{tpu_custom_call.1} parent=1 // pred_check
      _
    $region23: #{tpu_custom_call.1} parent=1 // pred_check_branch
      %107 = sbr.rel (0) target = $region25
    $region24: #{tpu_custom_call.1} parent=1 // pred_region
      %s109 = ssub.s32 32, 32
      %110 = vsyncadd [#allocation4], %s109
      %s112 = sshll.u32 [#allocation5], 4
      %s113 = int_to_ptr.vmem [resolvable:$true] %s112
      %115 = dma.vmem_to_hbm [thread:$0]  %s113, 32, %s1, [#allocation4]
    $region25: #{tpu_custom_call.1} parent=1 // pred_fallthru
      _
    // Predicated region
    $region26: #{tpu_custom_call.1} parent=1 // pred_check
      _
    $region27: #{tpu_custom_call.1} parent=1 // pred_check_branch
      %117 = sbr.rel (0) target = $region29
    $region28: #{tpu_custom_call.1} parent=1 // pred_region
      %118 = dma.done [#allocation4], 32
    $region29: #{tpu_custom_call.1} parent=1 // pred_fallthru
      _
    %119 = vsyncpa [#allocation3], 1
    %120 = vsyncpa [#allocation4], 1

</llo_original>
